<compile_context>
chip_gen: v6e
topology: v6e:2x2x1
jax: 0.10.0
libtpu: 0.0.40
codegen_flags: <defaults>
</compile_context>

<pallas_src>
import functools
import math

import jax
import jax.numpy as jnp
from jax.experimental import pallas as pl
from jax.experimental.pallas import tpu as pltpu


def _round_up(x, m):
    return ((x + m - 1) // m) * m


def _device_kind():
    try:
        return jax.devices()[0].device_kind.lower()
    except Exception:
        return ""


def _vmem_cap_bytes(kind):
    # v7x: 64 MiB per TensorCore -> leave ~16 MiB headroom.  v5e/v6e: 128 MiB physical.
    if "7" in kind:
        return 48 << 20
    return 96 << 20


def _default_tiles(kind):
    if "7" in kind:
        return 256, 512          # smaller VMEM, very fast HBM
    return 512, 512              # v5e / v6e: big row tile so weights aren't re-streamed


# ---------------------------------------------------------------------------
# Kernel
# ---------------------------------------------------------------------------
def glu_kernel(x_ref, wlg_ref, wo_ref, bo_ref, o_ref, *scratch, tk):
    """Grid = (row tiles, d_ff chunks).  d_ff axis is a reduction with resident accumulator."""
    acc_ref = scratch[0] if scratch else o_ref          # accumulate into o_ref when it is f32
    k = pl.program_id(1)

    @pl.when(k == 0)
    def _init():
        # Fold the output bias into the accumulator init.
        acc_ref[...] = jnp.broadcast_to(bo_ref[...].astype(jnp.float32), acc_ref.shape)

    x = x_ref[...]                                       # (TM, dmi) compute dtype (bias col = 1)
    # Fused [linear | gate] matmul for this d_ff chunk; biases ride in the wlg bias row.
    lg = jnp.dot(x, wlg_ref[0], preferred_element_type=jnp.float32)   # (TM, 2*tk) f32
    lin = lg[:, :tk]
    gate = lg[:, tk:]
    h = lin * jax.nn.sigmoid(gate)                       # f32 VPU/EUP
    acc_ref[...] += jnp.dot(h.astype(wo_ref.dtype), wo_ref[...],
                            preferred_element_type=jnp.float32)

    if scratch:                                          # only needed for non-f32 outputs
        @pl.when(k == pl.num_programs(1) - 1)
        def _store():
            o_ref[...] = acc_ref[...].astype(o_ref.dtype)


# ---------------------------------------------------------------------------
# One-time parameter packing (hoisted out of the forward pass)
# ---------------------------------------------------------------------------
def pack_glu_params(params, *, compute_dtype=jnp.bfloat16, tile_m=None, tile_k=None):
    d_model, d_ff = params["wl"].shape
    kind = _device_kind()
    cap = _vmem_cap_bytes(kind)
    tm_d, tk_d = _default_tiles(kind)
    tile_m = tm_d if tile_m is None else tile_m
    tile_k = tk_d if tile_k is None else tile_k

    dmi = _round_up(d_model + 1, 128)          # input features + bias column, lane aligned
    dmo = _round_up(d_model, 128)              # output features, lane aligned
    tile_k = max(128, _round_up(min(tile_k, _round_up(d_ff, 128)), 128))
    tile_m = max(16, _round_up(tile_m, 16))    # bf16 sublane packing needs multiples of 16
    cis = jnp.dtype(compute_dtype).itemsize

    def budget(tm, tk):
        blk = (tm * dmi * cis              # x block
               + dmi * 2 * tk * cis        # fused [wl|wg] block
               + tk * dmo * cis            # wo block
               + dmo * 4                   # bo
               + tm * dmo * 4)             # output block (f32 worst case)
        tmp = tm * 4 * tk * 4              # f32 lg (2*tk) + h (tk) temporaries, with slack
        acc = tm * dmo * 4                 # acc scratch worst case
        return 2 * blk + tmp + acc + (8 << 20)

    while budget(tile_m, tile_k) > cap and tile_k > 128:
        tile_k = max(128, _round_up(tile_k // 2, 128))
    while budget(tile_m, tile_k) > cap and tile_m > 16:
        tile_m = max(16, _round_up(tile_m // 2, 16))

    d_ff_p = _round_up(d_ff, tile_k)
    nk = d_ff_p // tile_k

    # Zero-pad and fold biases into the last used input row (matched by x's 1.0 column).
    wl_p = (jnp.zeros((dmi, d_ff_p), jnp.float32)
            .at[:d_model, :d_ff].set(params["wl"].astype(jnp.float32))
            .at[d_model, :d_ff].set(params["bl"].astype(jnp.float32)))
    wg_p = (jnp.zeros((dmi, d_ff_p), jnp.float32)
            .at[:d_model, :d_ff].set(params["wg"].astype(jnp.float32))
            .at[d_model, :d_ff].set(params["bg"].astype(jnp.float32)))
    wlg = jnp.concatenate(
        [wl_p.reshape(dmi, nk, tile_k).transpose(1, 0, 2),
         wg_p.reshape(dmi, nk, tile_k).transpose(1, 0, 2)],
        axis=-1).astype(compute_dtype)                         # (nk, dmi, 2*tile_k)
    wo = (jnp.zeros((d_ff_p, dmo), jnp.float32)
          .at[:d_ff, :d_model].set(params["wo"].astype(jnp.float32))
          ).astype(compute_dtype)                              # (d_ff_p, dmo)
    bo = jnp.zeros((1, dmo), jnp.float32).at[0, :d_model].set(params["bo"].astype(jnp.float32))

    return dict(wlg=wlg, wo=wo, bo=bo,
                d_model=d_model, d_ff=d_ff, dmi=dmi, dmo=dmo,
                tile_m=tile_m, tile_k=tile_k, nk=nk,
                compute_dtype=jnp.dtype(compute_dtype), vmem_cap=cap)


# ---------------------------------------------------------------------------
# Forward
# ---------------------------------------------------------------------------
def glu_forward(x, packed, *, tile_m=None):
    """x: (..., d_model).  packed: output of pack_glu_params (weights already laid out)."""
    *lead, d_model = x.shape
    assert d_model == packed["d_model"], "x feature dim does not match packed params"
    out_dtype = x.dtype
    cd = packed["compute_dtype"]
    dmi, dmo = packed["dmi"], packed["dmo"]
    tile_k, nk = packed["tile_k"], packed["nk"]

    m = math.prod(lead) if lead else 1
    tm = packed["tile_m"] if tile_m is None else tile_m
    tm = max(16, _round_up(min(tm, _round_up(max(m, 1), 16)), 16))
    m_p = _round_up(max(m, 1), tm)

    # Pad rows / features; bias column (index d_model) is 1.0 so biases ride in the matmul.
    x2d = (jnp.zeros((m_p, dmi), cd)
           .at[:m, :d_model].set(x.reshape(m, d_model).astype(cd))
           .at[:, d_model].set(jnp.asarray(1.0, cd)))

    use_scratch = jnp.dtype(out_dtype) != jnp.dtype(jnp.float32)
    cis = jnp.dtype(cd).itemsize
    blk = (tm * dmi * cis + dmi * 2 * tile_k * cis + tile_k * dmo * cis
           + dmo * 4 + tm * dmo * jnp.dtype(out_dtype).itemsize)
    tmp = tm * 4 * tile_k * 4
    acc = tm * dmo * 4 if use_scratch else 0
    vmem_bytes = int(min(max(2 * blk + tmp + acc + (8 << 20), 16 << 20), packed["vmem_cap"]))

    grid = (m_p // tm, nk)
    # Serpentine over the d_ff axis: even row tiles go forward, odd ones backward, so the
    # weight chunk at a row-tile boundary is reused (Pallas skips the repeated DMA).
    wk = lambda i, k: k + (i % 2) * (nk - 1 - 2 * k)

    scratch_shapes = [pltpu.VMEM((tm, dmo), jnp.float32)] if use_scratch else []

    out2d = pl.pallas_call(
        functools.partial(glu_kernel, tk=tile_k),
        out_shape=jax.ShapeDtypeStruct((m_p, dmo), out_dtype),
        grid_spec=pltpu.PrefetchScalarGridSpec(
            num_scalar_prefetch=0,
            grid=grid,
            in_specs=[
                pl.BlockSpec((tm, dmi), lambda i, k: (i, 0)),                    # x rows
                pl.BlockSpec((1, dmi, 2 * tile_k), lambda i, k: (wk(i, k), 0, 0)),  # [wl|wg] chunk
                pl.BlockSpec((tile_k, dmo), lambda i, k: (wk(i, k), 0)),         # wo chunk
                pl.BlockSpec((1, dmo), lambda i, k: (0, 0)),                     # bo
            ],
            out_specs=pl.BlockSpec((tm, dmo), lambda i, k: (i, 0)),
            scratch_shapes=scratch_shapes,
        ),
        compiler_params=pltpu.CompilerParams(
            dimension_semantics=("parallel", "arbitrary"),
            vmem_limit_bytes=vmem_bytes,
        ),
    )(x2d, packed["wlg"], packed["wo"], packed["bo"])

    return out2d[:m, :d_model].reshape(*lead, d_model)


# ---------------------------------------------------------------------------
# Params / reference
# ---------------------------------------------------------------------------
def init_params(key, d_model, d_ff):
    """Deterministic synthetic weights; stored as (in, out) = torch_weight.T."""
    ks = jax.random.split(key, 6)
    scale_in = 1.0 / jnp.sqrt(d_model)
    scale_ff = 1.0 / jnp.sqrt(d_ff)
    return {
        "wl": jax.random.uniform(ks[0], (d_model, d_ff), jnp.float32, -scale_in, scale_in),
        "bl": jax.random.uniform(ks[1], (d_ff,), jnp.float32, -scale_in, scale_in),
        "wg": jax.random.uniform(ks[2], (d_model, d_ff), jnp.float32, -scale_in, scale_in),
        "bg": jax.random.uniform(ks[3], (d_ff,), jnp.float32, -scale_in, scale_in),
        "wo": jax.random.uniform(ks[4], (d_ff, d_model), jnp.float32, -scale_ff, scale_ff),
        "bo": jax.random.uniform(ks[5], (d_model,), jnp.float32, -scale_ff, scale_ff),
    }


def glu_reference(x, params):
    """Plain-JAX f32 reference of the PyTorch forward (dropout = identity)."""
    g = jax.nn.sigmoid(x @ params["wg"] + params["bg"])
    h = (x @ params["wl"] + params["bl"]) * g
    return h @ params["wo"] + params["bo"]


if __name__ == "__main__":
    key = jax.random.PRNGKey(0)
    k_x, k_p = jax.random.split(key)

    batch, seq, d_model, d_ff = 2, 8, 32, 64
    x = jax.random.normal(k_x, (batch, seq, d_model), jnp.float32)
    params = init_params(k_p, d_model, d_ff)
    ref = glu_reference(x, params)

    # Structural check: f32 compute path must match the reference tightly.
    packed_f32 = pack_glu_params(params, compute_dtype=jnp.float32)
    out_f32 = jax.block_until_ready(glu_forward(x, packed_f32))
    assert out_f32.shape == (batch, seq, d_model)
    assert jnp.allclose(out_f32, ref, atol=1e-4, rtol=1e-4), "f32 path mismatch vs reference"

    # Default (bf16 MXU, f32 accumulation) path: looser tolerance for bf16 quantization.
    packed = pack_glu_params(params)
    out = jax.block_until_ready(glu_forward(x, packed))
    assert out.shape == (batch, seq, d_model)
    assert jnp.allclose(out, ref, atol=3e-2, rtol=3e-2), "bf16 path mismatch vs reference"

    print("KERNEL_OK")
</pallas_src>

<mosaic_0001>
module attributes {stable_mosaic.version = 11 : i64} {
  func.func @glu_kernel(%arg0: i32, %arg1: i32, %arg2: memref<16x128xf32, #tpu.memory_space<vmem>>, %arg3: memref<1x128x256xf32, #tpu.memory_space<vmem>>, %arg4: memref<128x128xf32, #tpu.memory_space<vmem>>, %arg5: memref<1x128xf32, #tpu.memory_space<vmem>>, %arg6: memref<16x128xf32, #tpu.memory_space<vmem>>) attributes {dimension_semantics = [#tpu.dimension_semantics<parallel>, #tpu.dimension_semantics<arbitrary>], iteration_bounds = array<i64: 1, 1>, scalar_prefetch = 0 : i64, scratch_operands = 0 : i64, tpu.core_type = #tpu.core_type<tc>, window_params = [{transform_indices = @transform_0, window_bounds = array<i64: 16, 128>}, {transform_indices = @transform_1, window_bounds = array<i64: 1, 128, 256>}, {transform_indices = @transform_2, window_bounds = array<i64: 128, 128>}, {pipeline_mode = #tpu.pipeline_mode<synchronous>, transform_indices = @transform_3, window_bounds = array<i64: 1, 128>}, {transform_indices = @transform_4, window_bounds = array<i64: 16, 128>}]} {
    %c0_i32 = arith.constant 0 : i32
    %0 = arith.cmpi eq, %arg1, %c0_i32 : i32
    %1 = arith.extui %0 : i1 to i32
    %c0_i32_0 = arith.constant 0 : i32
    %2 = arith.cmpi ne, %1, %c0_i32_0 : i32
    scf.if %2 {
      %c0_13 = arith.constant 0 : index
      %c0_14 = arith.constant 0 : index
      %20 = vector.load %arg5[%c0_13, %c0_14] : memref<1x128xf32, #tpu.memory_space<vmem>>, vector<1x128xf32>
      %21 = vector.shape_cast %20 : vector<1x128xf32> to vector<1x128xf32>
      %22 = vector.broadcast %21 : vector<1x128xf32> to vector<16x128xf32>
      %c0_15 = arith.constant 0 : index
      %c0_16 = arith.constant 0 : index
      %23 = vector.load %arg6[%c0_15, %c0_16] : memref<16x128xf32, #tpu.memory_space<vmem>>, vector<16x128xf32>
      tpu.vector_store %arg6[%c0_15, %c0_16], %22 {strides = array<i32>} : memref<16x128xf32, #tpu.memory_space<vmem>>, vector<16x128xf32>,
    } else {
    }
    %c0 = arith.constant 0 : index
    %c0_1 = arith.constant 0 : index
    %3 = vector.load %arg2[%c0, %c0_1] : memref<16x128xf32, #tpu.memory_space<vmem>>, vector<16x128xf32>
    %c0_2 = arith.constant 0 : index
    %c0_3 = arith.constant 0 : index
    %c0_4 = arith.constant 0 : index
    %4 = vector.load %arg3[%c0_2, %c0_3, %c0_4] : memref<1x128x256xf32, #tpu.memory_space<vmem>>, vector<1x128x256xf32>
    %5 = vector.shape_cast %4 : vector<1x128x256xf32> to vector<128x256xf32>
    %cst = arith.constant dense<0.000000e+00> : vector<16x256xf32>
    %6 = tpu.matmul %3, %5, %cst {dimension_numbers = #tpu.dot_dimension_numbers<[1], [0], [0], [1], [0, 0, 1, 1], [], []>} : vector<16x128xf32>, vector<128x256xf32>, vector<16x256xf32> -> vector<16x256xf32>
    %7 = vector.extract_strided_slice %6 {offsets = [0, 0], sizes = [16, 128], strides = [1, 1]} : vector<16x256xf32> to vector<16x128xf32>
    %8 = vector.extract_strided_slice %6 {offsets = [0, 128], sizes = [16, 128], strides = [1, 1]} : vector<16x256xf32> to vector<16x128xf32>
    %9 = arith.negf %8 : vector<16x128xf32>
    %10 = math.exp %9 : vector<16x128xf32>
    %cst_5 = arith.constant 1.000000e+00 : f32
    %11 = vector.broadcast %cst_5 : f32 to vector<16x128xf32>
    %12 = arith.addf %11, %10 : vector<16x128xf32>
    %13 = arith.divf %11, %12 : vector<16x128xf32>
    %14 = arith.mulf %7, %13 : vector<16x128xf32>
    %c0_6 = arith.constant 0 : index
    %c0_7 = arith.constant 0 : index
    %15 = vector.load %arg6[%c0_6, %c0_7] : memref<16x128xf32, #tpu.memory_space<vmem>>, vector<16x128xf32>
    %c0_8 = arith.constant 0 : index
    %c0_9 = arith.constant 0 : index
    %16 = vector.load %arg4[%c0_8, %c0_9] : memref<128x128xf32, #tpu.memory_space<vmem>>, vector<128x128xf32>
    %cst_10 = arith.constant dense<0.000000e+00> : vector<16x128xf32>
    %17 = tpu.matmul %14, %16, %cst_10 {dimension_numbers = #tpu.dot_dimension_numbers<[1], [0], [0], [1], [0, 0, 1, 1], [], []>} : vector<16x128xf32>, vector<128x128xf32>, vector<16x128xf32> -> vector<16x128xf32>
    %18 = arith.addf %15, %17 : vector<16x128xf32>
    %c0_11 = arith.constant 0 : index
    %c0_12 = arith.constant 0 : index
    %19 = vector.load %arg6[%c0_11, %c0_12] : memref<16x128xf32, #tpu.memory_space<vmem>>, vector<16x128xf32>
    tpu.vector_store %arg6[%c0_11, %c0_12], %18 {strides = array<i32>} : memref<16x128xf32, #tpu.memory_space<vmem>>, vector<16x128xf32>,
    return
  }
  func.func @transform_0(%arg0: i32, %arg1: i32) -> (i32, i32) {
    %c0_i32 = arith.constant 0 : i32
    %c0_i32_0 = arith.constant 0 : i32
    return %arg0, %c0_i32 : i32, i32
  }
  func.func @transform_1(%arg0: i32, %arg1: i32) -> (i32, i32, i32) {
    %c2_i32 = arith.constant 2 : i32
    %c0_i32 = arith.constant 0 : i32
    %0 = arith.cmpi eq, %c2_i32, %c0_i32 : i32
    %c1_i32 = arith.constant 1 : i32
    %1 = arith.select %0, %c1_i32, %c2_i32 : i32
    %2 = arith.remsi %arg0, %1 : i32
    %c0_i32_0 = arith.constant 0 : i32
    %3 = arith.cmpi ne, %2, %c0_i32_0 : i32
    %c0_i32_1 = arith.constant 0 : i32
    %4 = arith.cmpi slt, %2, %c0_i32_1 : i32
    %c0_i32_2 = arith.constant 0 : i32
    %5 = arith.cmpi slt, %1, %c0_i32_2 : i32
    %6 = arith.xori %4, %5 : i1
    %7 = arith.andi %6, %3 : i1
    %8 = arith.addi %2, %1 : i32
    %9 = arith.select %7, %8, %2 : i32
    %c2_i32_3 = arith.constant 2 : i32
    %10 = arith.muli %c2_i32_3, %arg1 : i32
    %c0_i32_4 = arith.constant 0 : i32
    %11 = arith.subi %c0_i32_4, %10 : i32
    %12 = arith.muli %9, %11 : i32
    %13 = arith.addi %arg1, %12 : i32
    %c0_i32_5 = arith.constant 0 : i32
    %c0_i32_6 = arith.constant 0 : i32
    %c0_i32_7 = arith.constant 0 : i32
    return %13, %c0_i32_5, %c0_i32_6 : i32, i32, i32
  }
  func.func @transform_2(%arg0: i32, %arg1: i32) -> (i32, i32) {
    %c2_i32 = arith.constant 2 : i32
    %c0_i32 = arith.constant 0 : i32
    %0 = arith.cmpi eq, %c2_i32, %c0_i32 : i32
    %c1_i32 = arith.constant 1 : i32
    %1 = arith.select %0, %c1_i32, %c2_i32 : i32
    %2 = arith.remsi %arg0, %1 : i32
    %c0_i32_0 = arith.constant 0 : i32
    %3 = arith.cmpi ne, %2, %c0_i32_0 : i32
    %c0_i32_1 = arith.constant 0 : i32
    %4 = arith.cmpi slt, %2, %c0_i32_1 : i32
    %c0_i32_2 = arith.constant 0 : i32
    %5 = arith.cmpi slt, %1, %c0_i32_2 : i32
    %6 = arith.xori %4, %5 : i1
    %7 = arith.andi %6, %3 : i1
    %8 = arith.addi %2, %1 : i32
    %9 = arith.select %7, %8, %2 : i32
    %c2_i32_3 = arith.constant 2 : i32
    %10 = arith.muli %c2_i32_3, %arg1 : i32
    %c0_i32_4 = arith.constant 0 : i32
    %11 = arith.subi %c0_i32_4, %10 : i32
    %12 = arith.muli %9, %11 : i32
    %13 = arith.addi %arg1, %12 : i32
    %c0_i32_5 = arith.constant 0 : i32
    %c0_i32_6 = arith.constant 0 : i32
    return %13, %c0_i32_5 : i32, i32
  }
  func.func @transform_3(%arg0: i32, %arg1: i32) -> (i32, i32) {
    %c0_i32 = arith.constant 0 : i32
    %c0_i32_0 = arith.constant 0 : i32
    %c0_i32_1 = arith.constant 0 : i32
    return %c0_i32, %c0_i32_0 : i32, i32
  }
  func.func @transform_4(%arg0: i32, %arg1: i32) -> (i32, i32) {
    %c0_i32 = arith.constant 0 : i32
    %c0_i32_0 = arith.constant 0 : i32
    return %arg0, %c0_i32 : i32, i32
  }
}

</mosaic_0001>

<llo_original>
// kernel: tpu_custom_call.1
$region0: #{tpu_custom_call.1}
  #allocation0 [shape = 'u32[]', space=smem, size = 0x4, offset = 0x4, fixed_abs, tag = 'smem constant byte address 0x4 - core index']
  #allocation1 [shape = 'u32[144,128]{1,0:T(1,128)}', space=vmem, size = 0x12000, scoped, tag = 'internal scratch']
  %s0 = inlined_call_operand.hbm [shape: f32[16,128], index: 0, kind: input, shape index: {}]
  %s1 = inlined_call_operand.hbm [shape: f32[1,128,256], index: 1, kind: input, shape index: {}]
  %s2 = inlined_call_operand.hbm [shape: f32[128,128], index: 2, kind: input, shape index: {}]
  %s3 = inlined_call_operand.vmem [shape: f32[1,128], index: 3, kind: input, shape index: {}]
  %s4 = inlined_call_operand.hbm [shape: f32[16,128], index: 4, kind: output, shape index: {}]
  %s5 = sld [smem:[#allocation0]]
  $region42: #{tpu_custom_call.1} parent=0
    _
  %s7 = ssub.s32 1, %s5
  %s8 = scalar_select 0, %s7, %s5
  $region1: #{tpu_custom_call.1} parent=0
    #allocation2 [shape = 'u8[8192]{0}', space=vmem, size = 0x2000, scoped, tag = 'input window, operand 0, single buffered']
    #allocation3 [shape = 's32[1]{0}', space=sflag, size = 0x4, scoped, tag = 'scoped memory for tpu_custom_call.1']
    #allocation4 [shape = 's32[1]{0}', space=sflag, size = 0x4, scoped, tag = 'scoped memory for tpu_custom_call.1']
    #allocation5 [shape = 'u8[131072]{0}', space=vmem, size = 0x20000, scoped, tag = 'input window, operand 1, single buffered']
    #allocation6 [shape = 's32[1]{0}', space=sflag, size = 0x4, scoped, tag = 'scoped memory for tpu_custom_call.1']
    #allocation7 [shape = 'u8[65536]{0}', space=vmem, size = 0x10000, scoped, tag = 'input window, operand 2, single buffered']
    #allocation8 [shape = 'u8[8192]{0}', space=vmem, size = 0x2000, scoped, tag = 'output window, operand 0, single buffered']
    %9 = vsyncpa [#allocation3], 0
    %10 = vsyncpa [#allocation6], 0
    %11 = vsyncpa [#allocation4], 0
    // Predicated region
    $region2: #{tpu_custom_call.1} parent=1 // pred_check
      _
    $region3: #{tpu_custom_call.1} parent=1 // pred_check_branch
      %13 = sbr.rel (0) target = $region5
    $region4: #{tpu_custom_call.1} parent=1 // pred_region
      %s15 = ssub.s32 256, 256
      %16 = vsyncadd [#allocation3], %s15
      %s17 = sshll.u32 [#allocation2], 4
      %s18 = int_to_ptr.vmem [resolvable:$true] %s17
      %23 = dma.hbm_to_vmem [thread:$0]  %s0, 256, %s18, [#allocation3], 128, 128, 8
    $region5: #{tpu_custom_call.1} parent=1 // pred_fallthru
      _
    // Predicated region
    $region6: #{tpu_custom_call.1} parent=1 // pred_check
      _
    $region7: #{tpu_custom_call.1} parent=1 // pred_check_branch
      %25 = sbr.rel (0) target = $region9
    $region8: #{tpu_custom_call.1} parent=1 // pred_region
      %s26 = ssub.s32 0, 0
      %s27 = ssub.s32 0, 0
      %p28 = scmp.ne.s32.totalorder 0, 0
      %p29 = scmp.lt.s32.totalorder 0, 0
      %p30 = pnand %p29, %p28
      %p31 = pneg %p30
      %s32 = sadd.s32 0, 2
      %s33 = scalar_select %p31, %s32, 0
      %s34 = smul.u32 0, 2
      %s35 = ssub.s32 0, %s34
      %s36 = smul.u32 %s33, %s35
      %s37 = sadd.s32 0, %s36
      %s39 = ssub.s32 4096, 4096
      %40 = vsyncadd [#allocation6], %s39
      %s41 = smul.addr %s37, 32
      %s42 = smul.addr %s41, 128
      %s43 = scalar_lea.hbm %s1, %s42
      %s44 = sshll.u32 [#allocation5], 4
      %s45 = int_to_ptr.vmem [resolvable:$true] %s44
      %50 = dma.hbm_to_vmem [thread:$0]  %s43, 4096, %s45, [#allocation6], 256, 256, 16
    $region9: #{tpu_custom_call.1} parent=1 // pred_fallthru
      _
    // Predicated region
    $region10: #{tpu_custom_call.1} parent=1 // pred_check
      _
    $region11: #{tpu_custom_call.1} parent=1 // pred_check_branch
      %52 = sbr.rel (0) target = $region13
    $region12: #{tpu_custom_call.1} parent=1 // pred_region
      %s53 = ssub.s32 0, 0
      %s54 = ssub.s32 0, 0
      %p55 = scmp.ne.s32.totalorder 0, 0
      %p56 = scmp.lt.s32.totalorder 0, 0
      %p57 = pnand %p56, %p55
      %p58 = pneg %p57
      %s59 = sadd.s32 0, 2
      %s60 = scalar_select %p58, %s59, 0
      %s61 = smul.u32 0, 2
      %s62 = ssub.s32 0, %s61
      %s63 = smul.u32 %s60, %s62
      %s64 = sadd.s32 0, %s63
      %s65 = smul.u32 16, %s64
      %s67 = ssub.s32 2048, 2048
      %68 = vsyncadd [#allocation6], %s67
      %s69 = smul.addr %s65, 128
      %s70 = scalar_lea.hbm %s2, %s69
      %s71 = sshll.u32 [#allocation7], 4
      %s72 = int_to_ptr.vmem [resolvable:$true] %s71
      %77 = dma.hbm_to_vmem [thread:$0]  %s70, 2048, %s72, [#allocation6], 128, 128, 8
    $region13: #{tpu_custom_call.1} parent=1 // pred_fallthru
      _
    // Predicated region
    $region14: #{tpu_custom_call.1} parent=1 // pred_check
      _
    $region15: #{tpu_custom_call.1} parent=1 // pred_check_branch
      %79 = sbr.rel (0) target = $region17
    $region16: #{tpu_custom_call.1} parent=1 // pred_region
      _
    $region17: #{tpu_custom_call.1} parent=1 // pred_fallthru
      _
    // Predicated region
    $region18: #{tpu_custom_call.1} parent=1 // pred_check
      _
    $region19: #{tpu_custom_call.1} parent=1 // pred_check_branch
      %81 = sbr.rel (0) target = $region21
    $region20: #{tpu_custom_call.1} parent=1 // pred_region
      %82 = dma.done [#allocation3], 256
    $region21: #{tpu_custom_call.1} parent=1 // pred_fallthru
      _
    // Predicated region
    $region22: #{tpu_custom_call.1} parent=1 // pred_check
      _
    $region23: #{tpu_custom_call.1} parent=1 // pred_check_branch
      %84 = sbr.rel (0) target = $region25
    $region24: #{tpu_custom_call.1} parent=1 // pred_region
      %85 = dma.done [#allocation6], 4096
    $region25: #{tpu_custom_call.1} parent=1 // pred_fallthru
      _
    // Predicated region
    $region26: #{tpu_custom_call.1} parent=1 // pred_check
      _
    $region27: #{tpu_custom_call.1} parent=1 // pred_check_branch
      %87 = sbr.rel (0) target = $region29
    $region28: #{tpu_custom_call.1} parent=1 // pred_region
      %88 = dma.done [#allocation6], 2048
    $region29: #{tpu_custom_call.1} parent=1 // pred_fallthru
      _
    %s89 = ssub.s32 0, 0
    %s90 = ssub.s32 0, 0
    %p91 = scmp.ne.s32.totalorder 0, 0
    %p92 = scmp.lt.s32.totalorder 0, 0
    %p93 = pnand %p92, %p91
    %p94 = pneg %p93
    %s95 = sadd.s32 0, 2
    %s96 = scalar_select %p94, %s95, 0
    %s97 = smul.u32 0, 2
    %s98 = ssub.s32 0, %s97
    %s99 = smul.u32 %s96, %s98
    %s100 = sadd.s32 0, %s99
    %s101 = ssub.s32 0, 0
    %s102 = ssub.s32 0, 0
    %p103 = scmp.ne.s32.totalorder 0, 0
    %p104 = scmp.lt.s32.totalorder 0, 0
    %p105 = pnand %p104, %p103
    %p106 = pneg %p105
    %s107 = sadd.s32 0, 2
    %s108 = scalar_select %p106, %s107, 0
    %s109 = smul.u32 0, 2
    %s110 = ssub.s32 0, %s109
    %s111 = smul.u32 %s108, %s110
    %s112 = sadd.s32 0, %s111
    %s113 = smul.u32 16, %s112
    %p114 = scmp.eq.s32.totalorder 0, 0
    // Predicated region
    $region30: #{tpu_custom_call.1} parent=1 // pred_check
      %p115 = pneg %p114
    $region31: #{tpu_custom_call.1} parent=1 // pred_check_branch
      %117 = sbr.rel (%p115) target = $region33
    $region32: #{tpu_custom_call.1} parent=1 // pred_region
      %v118 = vld [vmem:[%s3] sm:$0x1]
      %v120 = vlaneseq
      %v121 = vshrl.u32 %v120, 7
      %v122 = vsub.s32 0, %v121
      %v123 = vrot.slane %v118, %v122
      %125 = vst [vmem:[#allocation8] sm:$0xff] %v123
      %126 = vst [vmem:[#allocation8 + $0x8] sm:$0xff] %v123
    $region33: #{tpu_custom_call.1} parent=1 // pred_fallthru
      _
    %v127 = vld [vmem:[#allocation2] sm:$0xff]
    %v128 = vld [vmem:[#allocation2 + $0x8] sm:$0xff]
    %v129 = vld [vmem:[#allocation5] sm:$0xff]
    %v130 = vld [vmem:[#allocation5 + $0x8] sm:$0xff]
    %v131 = vld [vmem:[#allocation5 + $0x10] sm:$0xff]
    %v132 = vld [vmem:[#allocation5 + $0x18] sm:$0xff]
    %v133 = vld [vmem:[#allocation5 + $0x20] sm:$0xff]
    %v134 = vld [vmem:[#allocation5 + $0x28] sm:$0xff]
    %v135 = vld [vmem:[#allocation5 + $0x30] sm:$0xff]
    %v136 = vld [vmem:[#allocation5 + $0x38] sm:$0xff]
    %v137 = vld [vmem:[#allocation5 + $0x40] sm:$0xff]
    %v138 = vld [vmem:[#allocation5 + $0x48] sm:$0xff]
    %v139 = vld [vmem:[#allocation5 + $0x50] sm:$0xff]
    %v140 = vld [vmem:[#allocation5 + $0x58] sm:$0xff]
    %v141 = vld [vmem:[#allocation5 + $0x60] sm:$0xff]
    %v142 = vld [vmem:[#allocation5 + $0x68] sm:$0xff]
    %v143 = vld [vmem:[#allocation5 + $0x70] sm:$0xff]
    %v144 = vld [vmem:[#allocation5 + $0x78] sm:$0xff]
    %v145 = vld [vmem:[#allocation5 + $0x80] sm:$0xff]
    %v146 = vld [vmem:[#allocation5 + $0x88] sm:$0xff]
    %v147 = vld [vmem:[#allocation5 + $0x90] sm:$0xff]
    %v148 = vld [vmem:[#allocation5 + $0x98] sm:$0xff]
    %v149 = vld [vmem:[#allocation5 + $0xa0] sm:$0xff]
    %v150 = vld [vmem:[#allocation5 + $0xa8] sm:$0xff]
    %v151 = vld [vmem:[#allocation5 + $0xb0] sm:$0xff]
    %v152 = vld [vmem:[#allocation5 + $0xb8] sm:$0xff]
    %v153 = vld [vmem:[#allocation5 + $0xc0] sm:$0xff]
    %v154 = vld [vmem:[#allocation5 + $0xc8] sm:$0xff]
    %v155 = vld [vmem:[#allocation5 + $0xd0] sm:$0xff]
    %v156 = vld [vmem:[#allocation5 + $0xd8] sm:$0xff]
    %v157 = vld [vmem:[#allocation5 + $0xe0] sm:$0xff]
    %v158 = vld [vmem:[#allocation5 + $0xe8] sm:$0xff]
    %v159 = vld [vmem:[#allocation5 + $0xf0] sm:$0xff]
    %v160 = vld [vmem:[#allocation5 + $0xf8] sm:$0xff]
    %161 = vmatprep.subr.mxu0 %v160
    %162 = vmatpush1.msra.mxu0 %v159
    %163 = vmatprep.subr.mxu0 %v158
    %164 = vmatpush1.msra.mxu0 %v157
    %165 = vmatprep.subr.mxu0 %v156
    %166 = vmatpush1.msra.mxu0 %v155
    %167 = vmatprep.subr.mxu0 %v154
    %168 = vmatpush1.msra.mxu0 %v153
    %169 = vmatprep.subr.mxu0 %v152
    %170 = vmatpush1.msra.mxu0 %v151
    %171 = vmatprep.subr.mxu0 %v150
    %172 = vmatpush1.msra.mxu0 %v149
    %173 = vmatprep.subr.mxu0 %v148
    %174 = vmatpush1.msra.mxu0 %v147
    %175 = vmatprep.subr.mxu0 %v146
    %176 = vmatpush1.msra.mxu0 %v145
    %177 = vmatprep.subr.mxu0 %v144
    %178 = vmatpush1.msra.mxu0 %v143
    %179 = vmatprep.subr.mxu0 %v142
    %180 = vmatpush1.msra.mxu0 %v141
    %181 = vmatprep.subr.mxu0 %v140
    %182 = vmatpush1.msra.mxu0 %v139
    %183 = vmatprep.subr.mxu0 %v138
    %184 = vmatpush1.msra.mxu0 %v137
    %185 = vmatprep.subr.mxu0 %v136
    %186 = vmatpush1.msra.mxu0 %v135
    %187 = vmatprep.subr.mxu0 %v134
    %188 = vmatpush1.msra.mxu0 %v133
    %189 = vmatprep.subr.mxu0 %v132
    %190 = vmatpush1.msra.mxu0 %v131
    %191 = vmatprep.subr.mxu0 %v130
    %192 = vmatpush1.msra.mxu0 %v129
    %193 = vmatprep.subr.mxu0 0.0
    %194 = vmatpush2.msra.mxu0 0.0
    %195 = vmatprep.subr.mxu0 0.0
    %196 = vmatpush2.msra.mxu0 0.0
    %197 = vmatprep.subr.mxu0 0.0
    %198 = vmatpush2.msra.mxu0 0.0
    %199 = vmatprep.subr.mxu0 0.0
    %200 = vmatpush2.msra.mxu0 0.0
    %201 = vmatprep.subr.mxu0 0.0
    %202 = vmatpush2.msra.mxu0 0.0
    %203 = vmatprep.subr.mxu0 0.0
    %204 = vmatpush2.msra.mxu0 0.0
    %205 = vmatprep.subr.mxu0 0.0
    %206 = vmatpush2.msra.mxu0 0.0
    %207 = vmatprep.subr.mxu0 0.0
    %208 = vmatpush2.msra.mxu0 0.0
    %209 = vmatprep.subr.mxu0 0.0
    %210 = vmatpush2.msra.mxu0 0.0
    %211 = vmatprep.subr.mxu0 0.0
    %212 = vmatpush2.msra.mxu0 0.0
    %213 = vmatprep.subr.mxu0 0.0
    %214 = vmatpush2.msra.mxu0 0.0
    %215 = vmatprep.subr.mxu0 0.0
    %216 = vmatpush2.msra.mxu0 0.0
    %217 = vmatprep.subr.mxu0 0.0
    %218 = vmatpush2.msra.mxu0 0.0
    %219 = vmatprep.subr.mxu0 0.0
    %220 = vmatpush2.msra.mxu0 0.0
    %221 = vmatprep.subr.mxu0 0.0
    %222 = vmatpush2.msra.mxu0 0.0
    %223 = vmatprep.subr.mxu0 0.0
    %224 = vmatpush2.msra.mxu0 0.0
    %225 = vmatprep.mubr.f32.mxu0 0.0
    %226 = vmatmul.mubr.f32.gmra.mxu0 %v127
    %v227 = vpop.f32.mrf.mxu0
    %v228 = vadd.f32 0.0, %v227
    %v229 = vpop.f32.mrf.mxu0
    %v230 = vadd.f32 0.0, %v229
    %231 = vmatprep.mubr.f32.mxu0 0.0
    %232 = vmatmul.mubr.f32.gmra.mxu0 %v128
    %v233 = vpop.f32.mrf.mxu0
    %v234 = vadd.f32 0.0, %v233
    %v235 = vpop.f32.mrf.mxu0
    %v236 = vadd.f32 0.0, %v235
    %237 = vdwg.mxu0
    %v238 = vxor.u32 %v230, 2147483648
    %v239 = vxor.u32 %v236, 2147483648
    %v240 = vmul.f32 %v238, 1.442695
    %v241 = vpow.pop %v240
    %v242 = vmul.f32 %v239, 1.442695
    %v243 = vpow.pop %v242
    %v244 = vadd.f32 %v241, 1.0
    %v245 = vadd.f32 %v243, 1.0
    %v246 = vrcp.pop %v244
    %v247 = vmul.f32 1.0, %v246
    %v248 = vrcp.pop %v245
    %v249 = vmul.f32 1.0, %v248
    %v250 = vmul.f32 %v228, %v247
    %v251 = vmul.f32 %v234, %v249
    %v252 = vld [vmem:[#allocation8] sm:$0xff]
    %v253 = vld [vmem:[#allocation8 + $0x8] sm:$0xff]
    %v254 = vld [vmem:[#allocation7] sm:$0xff]
    %v255 = vld [vmem:[#allocation7 + $0x8] sm:$0xff]
    %v256 = vld [vmem:[#allocation7 + $0x10] sm:$0xff]
    %v257 = vld [vmem:[#allocation7 + $0x18] sm:$0xff]
    %v258 = vld [vmem:[#allocation7 + $0x20] sm:$0xff]
    %v259 = vld [vmem:[#allocation7 + $0x28] sm:$0xff]
    %v260 = vld [vmem:[#allocation7 + $0x30] sm:$0xff]
    %v261 = vld [vmem:[#allocation7 + $0x38] sm:$0xff]
    %v262 = vld [vmem:[#allocation7 + $0x40] sm:$0xff]
    %v263 = vld [vmem:[#allocation7 + $0x48] sm:$0xff]
    %v264 = vld [vmem:[#allocation7 + $0x50] sm:$0xff]
    %v265 = vld [vmem:[#allocation7 + $0x58] sm:$0xff]
    %v266 = vld [vmem:[#allocation7 + $0x60] sm:$0xff]
    %v267 = vld [vmem:[#allocation7 + $0x68] sm:$0xff]
    %v268 = vld [vmem:[#allocation7 + $0x70] sm:$0xff]
    %v269 = vld [vmem:[#allocation7 + $0x78] sm:$0xff]
    %270 = vmatprep.subr.mxu0 0.0
    %271 = vmatpush1.msra.mxu0 %v269
    %272 = vmatprep.subr.mxu0 0.0
    %273 = vmatpush1.msra.mxu0 %v268
    %274 = vmatprep.subr.mxu0 0.0
    %275 = vmatpush1.msra.mxu0 %v267
    %276 = vmatprep.subr.mxu0 0.0
    %277 = vmatpush1.msra.mxu0 %v266
    %278 = vmatprep.subr.mxu0 0.0
    %279 = vmatpush1.msra.mxu0 %v265
    %280 = vmatprep.subr.mxu0 0.0
    %281 = vmatpush1.msra.mxu0 %v264
    %282 = vmatprep.subr.mxu0 0.0
    %283 = vmatpush1.msra.mxu0 %v263
    %284 = vmatprep.subr.mxu0 0.0
    %285 = vmatpush1.msra.mxu0 %v262
    %286 = vmatprep.subr.mxu0 0.0
    %287 = vmatpush1.msra.mxu0 %v261
    %288 = vmatprep.subr.mxu0 0.0
    %289 = vmatpush1.msra.mxu0 %v260
    %290 = vmatprep.subr.mxu0 0.0
    %291 = vmatpush1.msra.mxu0 %v259
    %292 = vmatprep.subr.mxu0 0.0
    %293 = vmatpush1.msra.mxu0 %v258
    %294 = vmatprep.subr.mxu0 0.0
    %295 = vmatpush1.msra.mxu0 %v257
    %296 = vmatprep.subr.mxu0 0.0
    %297 = vmatpush1.msra.mxu0 %v256
    %298 = vmatprep.subr.mxu0 0.0
    %299 = vmatpush1.msra.mxu0 %v255
    %300 = vmatprep.subr.mxu0 0.0
    %301 = vmatpush1.msra.mxu0 %v254
    %302 = vmatprep.subr.mxu0 0.0
    %303 = vmatpush2.msra.mxu0 0.0
    %304 = vmatprep.subr.mxu0 0.0
    %305 = vmatpush2.msra.mxu0 0.0
    %306 = vmatprep.subr.mxu0 0.0
    %307 = vmatpush2.msra.mxu0 0.0
    %308 = vmatprep.subr.mxu0 0.0
    %309 = vmatpush2.msra.mxu0 0.0
    %310 = vmatprep.subr.mxu0 0.0
    %311 = vmatpush2.msra.mxu0 0.0
    %312 = vmatprep.subr.mxu0 0.0
    %313 = vmatpush2.msra.mxu0 0.0
    %314 = vmatprep.subr.mxu0 0.0
    %315 = vmatpush2.msra.mxu0 0.0
    %316 = vmatprep.subr.mxu0 0.0
    %317 = vmatpush2.msra.mxu0 0.0
    %318 = vmatprep.subr.mxu0 0.0
    %319 = vmatpush2.msra.mxu0 0.0
    %320 = vmatprep.subr.mxu0 0.0
    %321 = vmatpush2.msra.mxu0 0.0
    %322 = vmatprep.subr.mxu0 0.0
    %323 = vmatpush2.msra.mxu0 0.0
    %324 = vmatprep.subr.mxu0 0.0
    %325 = vmatpush2.msra.mxu0 0.0
    %326 = vmatprep.subr.mxu0 0.0
    %327 = vmatpush2.msra.mxu0 0.0
    %328 = vmatprep.subr.mxu0 0.0
    %329 = vmatpush2.msra.mxu0 0.0
    %330 = vmatprep.subr.mxu0 0.0
    %331 = vmatpush2.msra.mxu0 0.0
    %332 = vmatprep.subr.mxu0 0.0
    %333 = vmatpush2.msra.mxu0 0.0
    %334 = vmatprep.mubr.f32.mxu0 0.0
    %335 = vmatmul.mubr.f32.gmra.mxu0 %v250
    %v336 = vpop.f32.mrf.mxu0
    %v337 = vadd.f32 0.0, %v336
    %v338 = vpop.f32.mrf.mxu0
    %339 = vmatprep.mubr.f32.mxu0 0.0
    %340 = vmatmul.mubr.f32.gmra.mxu0 %v251
    %v341 = vpop.f32.mrf.mxu0
    %v342 = vadd.f32 0.0, %v341
    %v343 = vpop.f32.mrf.mxu0
    %344 = vdwg.mxu0
    %v345 = vadd.f32 %v252, %v337
    %v346 = vadd.f32 %v253, %v342
    %347 = vst [vmem:[#allocation8] sm:$0xff] %v345
    %348 = vst [vmem:[#allocation8 + $0x8] sm:$0xff] %v346
    // Predicated region
    $region34: #{tpu_custom_call.1} parent=1 // pred_check
      _
    $region35: #{tpu_custom_call.1} parent=1 // pred_check_branch
      %350 = sbr.rel (0) target = $region37
    $region36: #{tpu_custom_call.1} parent=1 // pred_region
      %s352 = ssub.s32 256, 256
      %353 = vsyncadd [#allocation4], %s352
      %s354 = sshll.u32 [#allocation8], 4
      %s355 = int_to_ptr.vmem [resolvable:$true] %s354
      %360 = dma.vmem_to_hbm [thread:$0]  %s355, 256, %s4, [#allocation4], 128, 128, 8
    $region37: #{tpu_custom_call.1} parent=1 // pred_fallthru
      _
    // Predicated region
    $region38: #{tpu_custom_call.1} parent=1 // pred_check
      _
    $region39: #{tpu_custom_call.1} parent=1 // pred_check_branch
      %362 = sbr.rel (0) target = $region41
    $region40: #{tpu_custom_call.1} parent=1 // pred_region
      %363 = dma.done [#allocation4], 256
    $region41: #{tpu_custom_call.1} parent=1 // pred_fallthru
      _
    %364 = vsyncpa [#allocation3], 1
    %365 = vsyncpa [#allocation6], 1
    %366 = vsyncpa [#allocation4], 1

</llo_original>
